<compile_context>
chip_gen: v7x
topology: tpu7x:2x2x1
jax: 0.10.0
libtpu: 0.0.40
codegen_flags: <defaults>
</compile_context>

<pallas_src>
import functools
import math
import re

import jax
import jax.numpy as jnp
from jax.experimental import pallas as pl
from jax.experimental.pallas import tpu as pltpu


# ---------------------------------------------------------------------------
# Positional-encoding table (built once, in the model compute dtype).
# ---------------------------------------------------------------------------
def build_pe_table(d_model: int, max_len: int = 5000,
                   dtype=jnp.float32) -> jnp.ndarray:
    """Deterministic positional-encoding buffer, shape (max_len, 1, d_model)."""
    position = jnp.arange(0, max_len, dtype=jnp.float32)[:, None]           # (max_len, 1)
    div_term = jnp.exp(
        jnp.arange(0, d_model, 2, dtype=jnp.float32) * (-math.log(10000.0) / d_model)
    )                                                                        # (d_model//2,)
    angles = position * div_term                                             # (max_len, d_model//2)
    pe = jnp.zeros((max_len, d_model), dtype=jnp.float32)
    pe = pe.at[:, 0::2].set(jnp.sin(angles))
    pe = pe.at[:, 1::2].set(jnp.cos(angles))
    # unsqueeze(0).transpose(0, 1) -> (max_len, 1, d_model)
    return pe[:, None, :].astype(dtype)


# ---------------------------------------------------------------------------
# Hardware-generation detection + per-generation tiling parameters.
# ---------------------------------------------------------------------------
def _tpu_generation() -> int:
    try:
        kind = jax.devices()[0].device_kind.lower()
    except Exception:
        return 6
    m = re.search(r"(\d+)", kind)
    return int(m.group(1)) if m else 6


def _gen_params(gen: int) -> dict:
    if gen >= 7:
        # 64 MiB VMEM / 32 MiB scoped default; 2 TCs -> want grid >= 2.
        return dict(target_block_bytes=5 << 20, vmem_budget=24 << 20, min_grid=2)
    if gen == 6:
        # 128 MiB VMEM / 32 MiB scoped default.
        return dict(target_block_bytes=4 << 20, vmem_budget=24 << 20, min_grid=1)
    # v5e and older / unknown: tightest scoped default (16 MiB), lowest HBM BW.
    return dict(target_block_bytes=2 << 20, vmem_budget=12 << 20, min_grid=1)


# ---------------------------------------------------------------------------
# Kernels.
# ---------------------------------------------------------------------------
def _pe_add_3d_kernel(x_ref, pe_ref, o_ref, *, upcast):
    # x_ref: (tile_s, B, D), pe_ref: (tile_s, 1, D) -> broadcast over batch.
    x = x_ref[...]
    pe = pe_ref[...]
    if upcast:  # v5e only (no bf16 VPU path)
        x = x.astype(jnp.float32)
        pe = pe.astype(jnp.float32)
    o_ref[...] = (x + pe).astype(o_ref.dtype)


def _pe_add_flat_kernel(x_ref, pe_ref, o_ref, *, batch, upcast):
    # x_ref: (tile_s, B*D), pe_ref: (tile_s, D) replicated across the B
    # lane-copies inside the kernel (XLU/VALU copies, no extra HBM traffic).
    x = x_ref[...]
    pe = pe_ref[...]
    if upcast:  # v5e only
        x = x.astype(jnp.float32)
        pe = pe.astype(jnp.float32)
    if batch > 1:
        pe = jnp.tile(pe, (1, batch))
    o_ref[...] = (x + pe).astype(o_ref.dtype)


# ---------------------------------------------------------------------------
# Tile-size selection (sublane-padding aware).
# ---------------------------------------------------------------------------
def _round_up(x: int, m: int) -> int:
    return ((x + m - 1) // m) * m


def _choose_tile_s(s: int, x_row_bytes: int, pe_row_bytes: int, tile_mult: int,
                   target_block_bytes: int, vmem_budget: int, min_grid: int) -> int:
    """Largest seq tile s.t. the x block is ~target_block_bytes AND the
    double-buffered padded footprint 2*(x + out + pe) fits the VMEM budget."""
    per_row_pipeline_bytes = 2 * (2 * x_row_bytes + pe_row_bytes)
    tile = min(target_block_bytes // max(1, x_row_bytes),
               vmem_budget // max(1, per_row_pipeline_bytes))
    tile = max(1, tile)
    # Ensure at least `min_grid` grid steps (v7x: keep both TensorCores busy).
    tile = min(tile, max(1, pl.cdiv(s, min_grid)))
    if tile >= s:
        return int(s)
    if tile_mult > 1:
        # (8,128) rule on the 2D path: tile_s must be a multiple of the sublane
        # tile (or equal the full seq length, handled above).
        tile = max(tile_mult, (tile // tile_mult) * tile_mult)
    return int(min(tile, s))


# ---------------------------------------------------------------------------
# Forward wrapper.
# ---------------------------------------------------------------------------
def positional_encoding_forward(x: jnp.ndarray, pe_table: jnp.ndarray) -> jnp.ndarray:
    """x: (S, B, D); pe_table: (max_len, 1, D), built in x.dtype, max_len >= S."""
    s, b, d = x.shape
    max_len = pe_table.shape[0]
    if s > max_len:
        raise ValueError(
            f"sequence length {s} exceeds positional-encoding max_len {max_len}")
    if pe_table.dtype != x.dtype:
        # Cast only the rows actually read (avoid a full-table HBM pass per call).
        pe_table = pe_table[:s].astype(x.dtype)

    gen = _tpu_generation()
    params = _gen_params(gen)
    itemsize = jnp.dtype(x.dtype).itemsize
    sub = {4: 8, 2: 16, 1: 32}.get(itemsize, 8)       # min sublane tile for dtype
    upcast = (x.dtype != jnp.float32) and gen <= 5    # v5e VPU has no bf16 path

    cost = pl.CostEstimate(
        flops=int(s * b * d),
        transcendentals=0,
        bytes_accessed=int((2 * s * b * d + s * d) * itemsize),
    )
    compiler_params = pltpu.CompilerParams(dimension_semantics=("parallel",))

    if b % sub == 0:
        # Batch already fills whole sublane tiles: 3D blocks, pe broadcast over
        # the batch axis. Padded per-seq-row bytes (last dim -> 128 lanes,
        # second-last -> sublane tile; pe's batch dim of 1 pads to `sub`).
        x_row_bytes = _round_up(b, sub) * _round_up(d, 128) * itemsize
        pe_row_bytes = sub * _round_up(d, 128) * itemsize
        tile_s = _choose_tile_s(s, x_row_bytes, pe_row_bytes, 1,
                                params["target_block_bytes"],
                                params["vmem_budget"], params["min_grid"])
        grid = (pl.cdiv(s, tile_s),)
        kernel = functools.partial(_pe_add_3d_kernel, upcast=upcast)
        return pl.pallas_call(
            kernel,
            out_shape=jax.ShapeDtypeStruct((s, b, d), x.dtype),
            grid_spec=pltpu.PrefetchScalarGridSpec(
                num_scalar_prefetch=0,
                grid=grid,
                in_specs=[
                    # Last two block dims equal the full (B, D) dims -> (8,128)
                    # rule satisfied regardless of B / D values.
                    pl.BlockSpec((tile_s, b, d), lambda i: (i, 0, 0)),
                    # Only the first cdiv(S, tile_s) row-blocks of pe are fetched.
                    pl.BlockSpec((tile_s, 1, d), lambda i: (i, 0, 0)),
                ],
                out_specs=pl.BlockSpec((tile_s, b, d), lambda i: (i, 0, 0)),
            ),
            compiler_params=compiler_params,
            cost_estimate=cost,
        )(x, pe_table)

    # Small / ragged batch: flatten (B, D) into a dense lane axis. The reshape
    # of a contiguous (S, B, D) array is a free view; it removes the 4-8x VMEM
    # sublane padding and turns masked vld/vst into full-width accesses.
    x2 = x.reshape(s, b * d)
    pe2 = pe_table.reshape(pe_table.shape[0], d)
    x_row_bytes = _round_up(b * d, 128) * itemsize
    pe_row_bytes = _round_up(d, 128) * itemsize
    tile_s = _choose_tile_s(s, x_row_bytes, pe_row_bytes, sub,
                            params["target_block_bytes"],
                            params["vmem_budget"], params["min_grid"])
    grid = (pl.cdiv(s, tile_s),)
    kernel = functools.partial(_pe_add_flat_kernel, batch=b, upcast=upcast)
    out2 = pl.pallas_call(
        kernel,
        out_shape=jax.ShapeDtypeStruct((s, b * d), x.dtype),
        grid_spec=pltpu.PrefetchScalarGridSpec(
            num_scalar_prefetch=0,
            grid=grid,
            in_specs=[
                pl.BlockSpec((tile_s, b * d), lambda i: (i, 0)),
                pl.BlockSpec((tile_s, d), lambda i: (i, 0)),
            ],
            out_specs=pl.BlockSpec((tile_s, b * d), lambda i: (i, 0)),
        ),
        compiler_params=compiler_params,
        cost_estimate=cost,
    )(x2, pe2)
    return out2.reshape(s, b, d)


if __name__ == "__main__":
    # Small shapes implied by the forward: x is (seq, batch, d_model).
    seq_len, batch, d_model = 8, 2, 32
    max_len = 64  # small synthetic buffer; >= seq_len

    key = jax.random.PRNGKey(0)
    x = jax.random.normal(key, (seq_len, batch, d_model), dtype=jnp.float32)

    # pe table built once in the model compute dtype (hoisted out of forward).
    pe_table = build_pe_table(d_model, max_len=max_len, dtype=x.dtype)

    # Reference (same math as the PyTorch module).
    ref = x + pe_table[:seq_len]

    out = positional_encoding_forward(x, pe_table)
    out = jax.block_until_ready(out)

    assert out.shape == x.shape
    assert jnp.allclose(out, ref, atol=1e-6), "mismatch vs reference"

    print("KERNEL_OK")
</pallas_src>

<mosaic_0001>
module attributes {stable_mosaic.version = 11 : i64} {
  func.func @_pe_add_flat_kernel(%arg0: i32, %arg1: memref<8x64xf32, #tpu.memory_space<vmem>>, %arg2: memref<8x32xf32, #tpu.memory_space<vmem>>, %arg3: memref<8x64xf32, #tpu.memory_space<vmem>>) attributes {dimension_semantics = [#tpu.dimension_semantics<parallel>], iteration_bounds = array<i64: 1>, scalar_prefetch = 0 : i64, scratch_operands = 0 : i64, tpu.core_type = #tpu.core_type<tc>, window_params = [{transform_indices = @transform_0, window_bounds = array<i64: 8, 64>}, {transform_indices = @transform_1, window_bounds = array<i64: 8, 32>}, {transform_indices = @transform_2, window_bounds = array<i64: 8, 64>}]} {
    %c0 = arith.constant 0 : index
    %c0_0 = arith.constant 0 : index
    %0 = vector.load %arg1[%c0, %c0_0] : memref<8x64xf32, #tpu.memory_space<vmem>>, vector<8x64xf32>
    %c0_1 = arith.constant 0 : index
    %c0_2 = arith.constant 0 : index
    %1 = vector.load %arg2[%c0_1, %c0_2] : memref<8x32xf32, #tpu.memory_space<vmem>>, vector<8x32xf32>
    %2 = tpu.concatenate %1, %1 in 1 : vector<8x32xf32>, vector<8x32xf32> -> vector<8x64xf32>
    %3 = arith.addf %0, %2 : vector<8x64xf32>
    %c0_3 = arith.constant 0 : index
    %c0_4 = arith.constant 0 : index
    %4 = vector.load %arg3[%c0_3, %c0_4] : memref<8x64xf32, #tpu.memory_space<vmem>>, vector<8x64xf32>
    tpu.vector_store %arg3[%c0_3, %c0_4], %3 {strides = array<i32>} : memref<8x64xf32, #tpu.memory_space<vmem>>, vector<8x64xf32>,
    return
  }
  func.func @transform_0(%arg0: i32) -> (i32, i32) {
    %c0_i32 = arith.constant 0 : i32
    %c0_i32_0 = arith.constant 0 : i32
    return %arg0, %c0_i32 : i32, i32
  }
  func.func @transform_1(%arg0: i32) -> (i32, i32) {
    %c0_i32 = arith.constant 0 : i32
    %c0_i32_0 = arith.constant 0 : i32
    return %arg0, %c0_i32 : i32, i32
  }
  func.func @transform_2(%arg0: i32) -> (i32, i32) {
    %c0_i32 = arith.constant 0 : i32
    %c0_i32_0 = arith.constant 0 : i32
    return %arg0, %c0_i32 : i32, i32
  }
}

</mosaic_0001>

<llo_original>
// kernel: tpu_custom_call.1
$region0: #{tpu_custom_call.1}
  #allocation0 [shape = 'u32[]', space=smem, size = 0x4, offset = 0x4, fixed_abs, tag = 'smem constant byte address 0x4 - core index']
  #allocation1 [shape = 'u32[144,128]{1,0:T(1,128)}', space=vmem, size = 0x12000, scoped, tag = 'internal scratch']
  %s0 = inlined_call_operand.vmem [shape: f32[8,64], index: 0, kind: input, shape index: {}]
  %s1 = inlined_call_operand.vmem [shape: f32[64,32], index: 1, kind: input, shape index: {}]
  %s2 = inlined_call_operand.hbm [shape: f32[8,64], index: 2, kind: output, shape index: {}]
  %s3 = sld [smem:[#allocation0]]
  $region18: #{tpu_custom_call.1} parent=0
    _
  %s5 = ssub.s32 1, %s3
  %s6 = scalar_select 0, %s5, %s3
  $region1: #{tpu_custom_call.1} parent=0
    #allocation2 [shape = 'u8[4096]{0}', space=vmem, size = 0x1000, scoped, tag = 'output window, operand 0, single buffered']
    #allocation3 [shape = 's32[1]{0}', space=sflag, size = 0x4, scoped, tag = 'scoped memory for tpu_custom_call.1']
    %7 = vsyncpa [#allocation3], 0
    // Predicated region
    $region2: #{tpu_custom_call.1} parent=1 // pred_check
      _
    $region3: #{tpu_custom_call.1} parent=1 // pred_check_branch
      %9 = sbr.rel (0) target = $region5
    $region4: #{tpu_custom_call.1} parent=1 // pred_region
      _
    $region5: #{tpu_custom_call.1} parent=1 // pred_fallthru
      _
    // Predicated region
    $region6: #{tpu_custom_call.1} parent=1 // pred_check
      _
    $region7: #{tpu_custom_call.1} parent=1 // pred_check_branch
      %11 = sbr.rel (0) target = $region9
    $region8: #{tpu_custom_call.1} parent=1 // pred_region
      _
    $region9: #{tpu_custom_call.1} parent=1 // pred_fallthru
      _
    %v12 = vld [vmem:[%s0] sm:$0xff]
    %v13 = vld [vmem:[%s1] sm:$0xff]
    %15 = vrot.lane.b32.xlu0 %v13, 32
    %v16 = vpop.permute.xlu0 %15
    %vm18 = vcmask 261120
    %v19 = vsel %vm18, %v13, %v16
    %v20 = vadd.f32 %v12, %v19
    %vm21 = vcmask 523264
    %22 = vst.msk [vmem:[#allocation2] sm:$0xff] %vm21, %v20
    // Predicated region
    $region10: #{tpu_custom_call.1} parent=1 // pred_check
      _
    $region11: #{tpu_custom_call.1} parent=1 // pred_check_branch
      %24 = sbr.rel (0) target = $region13
    $region12: #{tpu_custom_call.1} parent=1 // pred_region
      %s26 = ssub.s32 128, 128
      %27 = vsyncadd [#allocation3], %s26
      %s29 = sshll.u32 [#allocation2], 4
      %s30 = int_to_ptr.vmem [resolvable:$true] %s29
      %32 = dma.vmem_to_hbm [thread:$0]  %s30, 128, %s2, [#allocation3]
    $region13: #{tpu_custom_call.1} parent=1 // pred_fallthru
      _
    // Predicated region
    $region14: #{tpu_custom_call.1} parent=1 // pred_check
      _
    $region15: #{tpu_custom_call.1} parent=1 // pred_check_branch
      %34 = sbr.rel (0) target = $region17
    $region16: #{tpu_custom_call.1} parent=1 // pred_region
      %35 = dma.done [#allocation3], 128
    $region17: #{tpu_custom_call.1} parent=1 // pred_fallthru
      _
    %36 = vsyncpa [#allocation3], 1

</llo_original>
